<compile_context>
chip_gen: v5e
topology: v5e:2x2
jax: 0.10.0
libtpu: 0.0.40
codegen_flags: <defaults>
</compile_context>

<pallas_src>
import functools

import jax
import jax.numpy as jnp
from jax.experimental import pallas as pl
from jax.experimental.pallas import tpu as pltpu


def _round_up(x, m):
    return ((x + m - 1) // m) * m


# ---------------------------------------------------------------------------
# Fused actor + critic kernel (3 logical layers, 5 matmuls)
# ---------------------------------------------------------------------------
def _fused_kernel(x_ref, w1_ref, b1_ref,
                  aw2_ref, ab2_ref, cw2_ref, cb2_ref,
                  aw3_ref, cw3_ref, b3_ref, out_ref, *, h1):
    # ---- layer 1: single matmul for both towers (weights concatenated on lanes)
    xb = x_ref[...].astype(jnp.bfloat16)
    z1 = jnp.dot(xb, w1_ref[...], preferred_element_type=jnp.float32) + b1_ref[...]
    a1 = jnp.maximum(z1[:, :h1], 0.0).astype(jnp.bfloat16)   # actor half
    c1 = jnp.maximum(z1[:, h1:], 0.0).astype(jnp.bfloat16)   # critic half

    # ---- layer 2: towers have different inputs -> two matmuls (can't concat)
    a2 = jnp.maximum(
        jnp.dot(a1, aw2_ref[...], preferred_element_type=jnp.float32) + ab2_ref[...],
        0.0).astype(jnp.bfloat16)
    c2 = jnp.maximum(
        jnp.dot(c1, cw2_ref[...], preferred_element_type=jnp.float32) + cb2_ref[...],
        0.0).astype(jnp.bfloat16)

    # ---- layer 3: zero-padded heads -> one lane-dense slab [mu | v]
    #   aw3 = [pi_mu.W^T | 0], cw3 = [0 | v.W^T], b3 = [pi_mu.b | v.b]
    out = (jnp.dot(a2, aw3_ref[...], preferred_element_type=jnp.float32)
           + jnp.dot(c2, cw3_ref[...], preferred_element_type=jnp.float32)
           + b3_ref[...])
    out_ref[...] = out.astype(out_ref.dtype)


def _fused_forward(packed, obs, *, tile_b=512):
    """Runs the fused kernel; returns a (B, act_dim + 1) slab [mu | v] in f32."""
    B, obs_dim = obs.shape
    h1 = packed["aw2"].shape[0]          # first hidden size (split point of layer 1)
    h2 = packed["aw2"].shape[1]          # second hidden size
    out_w = packed["b3"].shape[1]        # act_dim + 1

    # Batch tiling: multiple of 8 sublanes; pad batch to a whole number of tiles.
    tb = min(tile_b, _round_up(B, 8))
    b_pad = _round_up(B, tb)
    if b_pad != B:
        obs = jnp.pad(obs, ((0, b_pad - B), (0, 0)))
    grid = (b_pad // tb,)

    def resident(shape):  # weights/biases: same block every grid step -> stay in VMEM
        return pl.BlockSpec(shape, lambda i: (0, 0))

    # Advisory cost estimate for XLA's scheduler (all static Python ints).
    flops = 2 * b_pad * (obs_dim * 2 * h1 + 2 * h1 * h2 + 2 * h2 * out_w)
    weight_bytes = sum(int(packed[k].size) * packed[k].dtype.itemsize
                       for k in ("w1", "b1", "aw2", "ab2", "cw2", "cb2",
                                 "aw3", "cw3", "b3"))
    bytes_accessed = int(obs.size) * 4 + weight_bytes + b_pad * out_w * 4
    cost = pl.CostEstimate(flops=int(flops), transcendentals=0,
                           bytes_accessed=int(bytes_accessed))

    out = pl.pallas_call(
        functools.partial(_fused_kernel, h1=h1),
        out_shape=jax.ShapeDtypeStruct((b_pad, out_w), jnp.float32),
        grid=grid,
        in_specs=[
            pl.BlockSpec((tb, obs_dim), lambda i: (i, 0)),   # obs, tiled over batch
            resident(packed["w1"].shape), resident(packed["b1"].shape),
            resident(packed["aw2"].shape), resident(packed["ab2"].shape),
            resident(packed["cw2"].shape), resident(packed["cb2"].shape),
            resident(packed["aw3"].shape), resident(packed["cw3"].shape),
            resident(packed["b3"].shape),
        ],
        out_specs=pl.BlockSpec((tb, out_w), lambda i: (i, 0)),
        compiler_params=pltpu.CompilerParams(dimension_semantics=("parallel",)),
        cost_estimate=cost,
    )(obs, packed["w1"], packed["b1"],
      packed["aw2"], packed["ab2"], packed["cw2"], packed["cb2"],
      packed["aw3"], packed["cw3"], packed["b3"])
    return out[:B]


@functools.partial(jax.jit, static_argnames=("tile_b",))
def mlp_actor_critic_forward(packed, obs, tile_b=512):
    """Returns (mu[B, act_dim], std[act_dim], v[B]) — matches the torch forward."""
    act_dim = packed["logstd"].shape[1]
    slab = _fused_forward(packed, obs, tile_b=tile_b)
    mu = slab[:, :act_dim]
    v = slab[:, act_dim]
    # obs-independent; hoisted out of the kernel (was a masked (1,A) store + exp)
    std = jnp.clip(jnp.exp(packed["logstd"][0]), 1e-6, 1.0)
    return mu, std, v


# ---------------------------------------------------------------------------
# Parameter construction + packing into the fused / bf16 kernel layout
# ---------------------------------------------------------------------------
def init_params(key, obs_dim, act_dim, hidden_sizes=(512, 512)):
    """Raw per-layer f32 params (torch nn.Linear init), weights pre-transposed to (in, out)."""
    def linear(key, fan_in, fan_out):
        kw, kb = jax.random.split(key)
        bound = 1.0 / jnp.sqrt(jnp.float32(fan_in))
        w_t = jax.random.uniform(kw, (fan_in, fan_out), jnp.float32, -bound, bound)
        b = jax.random.uniform(kb, (1, fan_out), jnp.float32, -bound, bound)
        return w_t, b

    keys = jax.random.split(key, 6)
    h1, h2 = hidden_sizes
    raw = {}
    raw["a_w1"], raw["a_b1"] = linear(keys[0], obs_dim, h1)
    raw["a_w2"], raw["a_b2"] = linear(keys[1], h1, h2)
    raw["a_w3"], raw["a_b3"] = linear(keys[2], h2, act_dim)
    raw["logstd"] = -0.5 * jnp.ones((1, act_dim), jnp.float32)
    raw["c_w1"], raw["c_b1"] = linear(keys[3], obs_dim, h1)
    raw["c_w2"], raw["c_b2"] = linear(keys[4], h1, h2)
    raw["c_w3"], raw["c_b3"] = linear(keys[5], h2, 1)
    return raw


def pack_params(raw, weight_dtype=jnp.bfloat16):
    """Fused-kernel layout: concat layer-1 weights, zero-pad layer-3 heads, bf16 weights."""
    h2 = raw["a_w3"].shape[0]
    act_dim = raw["a_w3"].shape[1]
    w1 = jnp.concatenate([raw["a_w1"], raw["c_w1"]], axis=1).astype(weight_dtype)
    b1 = jnp.concatenate([raw["a_b1"], raw["c_b1"]], axis=1)
    aw3 = jnp.concatenate([raw["a_w3"], jnp.zeros((h2, 1), jnp.float32)],
                          axis=1).astype(weight_dtype)
    cw3 = jnp.concatenate([jnp.zeros((h2, act_dim), jnp.float32), raw["c_w3"]],
                          axis=1).astype(weight_dtype)
    b3 = jnp.concatenate([raw["a_b3"], raw["c_b3"]], axis=1)
    return dict(
        w1=w1, b1=b1,
        aw2=raw["a_w2"].astype(weight_dtype), ab2=raw["a_b2"],
        cw2=raw["c_w2"].astype(weight_dtype), cb2=raw["c_b2"],
        aw3=aw3, cw3=cw3, b3=b3,
        logstd=raw["logstd"],
    )


# ---------------------------------------------------------------------------
# Plain-JAX reference (same bf16 matmul inputs / f32 accumulation as the kernel)
# ---------------------------------------------------------------------------
def _reference_forward(raw, obs):
    def lin(x, w, b):
        return jnp.dot(x.astype(jnp.bfloat16), w.astype(jnp.bfloat16),
                       preferred_element_type=jnp.float32) + b
    relu = lambda t: jnp.maximum(t, 0.0)
    a = relu(lin(obs, raw["a_w1"], raw["a_b1"]))
    a = relu(lin(a, raw["a_w2"], raw["a_b2"]))
    mu = lin(a, raw["a_w3"], raw["a_b3"])
    std = jnp.clip(jnp.exp(raw["logstd"][0]), 1e-6, 1.0)
    c = relu(lin(obs, raw["c_w1"], raw["c_b1"]))
    c = relu(lin(c, raw["c_w2"], raw["c_b2"]))
    v = lin(c, raw["c_w3"], raw["c_b3"])[:, 0]
    return mu, std, v


# ---------------------------------------------------------------------------
if __name__ == "__main__":
    key = jax.random.PRNGKey(0)
    k_params, k_obs = jax.random.split(key)

    B, OBS_DIM, ACT_DIM = 4, 16, 4
    HIDDEN = (128, 128)  # small for the example; default module uses (512, 512)

    raw = init_params(k_params, OBS_DIM, ACT_DIM, HIDDEN)
    packed = pack_params(raw)
    obs = jax.random.normal(k_obs, (B, OBS_DIM), jnp.float32)

    mu, std, v = mlp_actor_critic_forward(packed, obs)
    jax.block_until_ready((mu, std, v))

    # sanity check against a plain-JAX reference (same bf16/f32 mixed precision)
    mu_r, std_r, v_r = _reference_forward(raw, obs)
    assert mu.shape == (B, ACT_DIM) and std.shape == (ACT_DIM,) and v.shape == (B,)
    assert jnp.allclose(mu, mu_r, atol=1e-2, rtol=1e-2)
    assert jnp.allclose(std, std_r, atol=1e-6)
    assert jnp.allclose(v, v_r, atol=1e-2, rtol=1e-2)

    print("KERNEL_OK")
</pallas_src>

<mosaic_0001>
module attributes {stable_mosaic.version = 11 : i64} {
  func.func @_fused_kernel(%arg0: i32, %arg1: memref<8x16xf32, #tpu.memory_space<vmem>>, %arg2: memref<16x256xbf16, #tpu.memory_space<vmem>>, %arg3: memref<1x256xf32, #tpu.memory_space<vmem>>, %arg4: memref<128x128xbf16, #tpu.memory_space<vmem>>, %arg5: memref<1x128xf32, #tpu.memory_space<vmem>>, %arg6: memref<128x128xbf16, #tpu.memory_space<vmem>>, %arg7: memref<1x128xf32, #tpu.memory_space<vmem>>, %arg8: memref<128x5xbf16, #tpu.memory_space<vmem>>, %arg9: memref<128x5xbf16, #tpu.memory_space<vmem>>, %arg10: memref<1x5xf32, #tpu.memory_space<vmem>>, %arg11: memref<8x5xf32, #tpu.memory_space<vmem>>) attributes {dimension_semantics = [#tpu.dimension_semantics<parallel>], iteration_bounds = array<i64: 1>, scalar_prefetch = 0 : i64, scratch_operands = 0 : i64, tpu.core_type = #tpu.core_type<tc>, window_params = [{transform_indices = @transform_0, window_bounds = array<i64: 8, 16>}, {pipeline_mode = #tpu.pipeline_mode<synchronous>, transform_indices = @transform_1, window_bounds = array<i64: 16, 256>}, {pipeline_mode = #tpu.pipeline_mode<synchronous>, transform_indices = @transform_2, window_bounds = array<i64: 1, 256>}, {pipeline_mode = #tpu.pipeline_mode<synchronous>, transform_indices = @transform_3, window_bounds = array<i64: 128, 128>}, {pipeline_mode = #tpu.pipeline_mode<synchronous>, transform_indices = @transform_4, window_bounds = array<i64: 1, 128>}, {pipeline_mode = #tpu.pipeline_mode<synchronous>, transform_indices = @transform_5, window_bounds = array<i64: 128, 128>}, {pipeline_mode = #tpu.pipeline_mode<synchronous>, transform_indices = @transform_6, window_bounds = array<i64: 1, 128>}, {pipeline_mode = #tpu.pipeline_mode<synchronous>, transform_indices = @transform_7, window_bounds = array<i64: 128, 5>}, {pipeline_mode = #tpu.pipeline_mode<synchronous>, transform_indices = @transform_8, window_bounds = array<i64: 128, 5>}, {pipeline_mode = #tpu.pipeline_mode<synchronous>, transform_indices = @transform_9, window_bounds = array<i64: 1, 5>}, {transform_indices = @transform_10, window_bounds = array<i64: 8, 5>}]} {
    %c0 = arith.constant 0 : index
    %c0_0 = arith.constant 0 : index
    %0 = vector.load %arg1[%c0, %c0_0] : memref<8x16xf32, #tpu.memory_space<vmem>>, vector<8x16xf32>
    %1 = arith.truncf %0 : vector<8x16xf32> to vector<8x16xbf16>
    %c0_1 = arith.constant 0 : index
    %c0_2 = arith.constant 0 : index
    %2 = vector.load %arg2[%c0_1, %c0_2] : memref<16x256xbf16, #tpu.memory_space<vmem>>, vector<16x256xbf16>
    %cst = arith.constant dense<0.000000e+00> : vector<8x256xf32>
    %3 = tpu.matmul %1, %2, %cst {dimension_numbers = #tpu.dot_dimension_numbers<[1], [0], [0], [1], [0, 0, 1, 1], [], []>} : vector<8x16xbf16>, vector<16x256xbf16>, vector<8x256xf32> -> vector<8x256xf32>
    %c0_3 = arith.constant 0 : index
    %c0_4 = arith.constant 0 : index
    %4 = vector.load %arg3[%c0_3, %c0_4] : memref<1x256xf32, #tpu.memory_space<vmem>>, vector<1x256xf32>
    %5 = vector.broadcast %4 : vector<1x256xf32> to vector<8x256xf32>
    %6 = arith.addf %3, %5 : vector<8x256xf32>
    %7 = vector.extract_strided_slice %6 {offsets = [0, 0], sizes = [8, 128], strides = [1, 1]} : vector<8x256xf32> to vector<8x128xf32>
    %cst_5 = arith.constant 0.000000e+00 : f32
    %8 = vector.broadcast %cst_5 : f32 to vector<8x128xf32>
    %9 = arith.maximumf %7, %8 : vector<8x128xf32>
    %10 = arith.truncf %9 : vector<8x128xf32> to vector<8x128xbf16>
    %11 = vector.extract_strided_slice %6 {offsets = [0, 128], sizes = [8, 128], strides = [1, 1]} : vector<8x256xf32> to vector<8x128xf32>
    %cst_6 = arith.constant 0.000000e+00 : f32
    %12 = vector.broadcast %cst_6 : f32 to vector<8x128xf32>
    %13 = arith.maximumf %11, %12 : vector<8x128xf32>
    %14 = arith.truncf %13 : vector<8x128xf32> to vector<8x128xbf16>
    %c0_7 = arith.constant 0 : index
    %c0_8 = arith.constant 0 : index
    %15 = vector.load %arg4[%c0_7, %c0_8] : memref<128x128xbf16, #tpu.memory_space<vmem>>, vector<128x128xbf16>
    %cst_9 = arith.constant dense<0.000000e+00> : vector<8x128xf32>
    %16 = tpu.matmul %10, %15, %cst_9 {dimension_numbers = #tpu.dot_dimension_numbers<[1], [0], [0], [1], [0, 0, 1, 1], [], []>} : vector<8x128xbf16>, vector<128x128xbf16>, vector<8x128xf32> -> vector<8x128xf32>
    %c0_10 = arith.constant 0 : index
    %c0_11 = arith.constant 0 : index
    %17 = vector.load %arg5[%c0_10, %c0_11] : memref<1x128xf32, #tpu.memory_space<vmem>>, vector<1x128xf32>
    %18 = vector.broadcast %17 : vector<1x128xf32> to vector<8x128xf32>
    %19 = arith.addf %16, %18 : vector<8x128xf32>
    %cst_12 = arith.constant 0.000000e+00 : f32
    %20 = vector.broadcast %cst_12 : f32 to vector<8x128xf32>
    %21 = arith.maximumf %19, %20 : vector<8x128xf32>
    %22 = arith.truncf %21 : vector<8x128xf32> to vector<8x128xbf16>
    %c0_13 = arith.constant 0 : index
    %c0_14 = arith.constant 0 : index
    %23 = vector.load %arg6[%c0_13, %c0_14] : memref<128x128xbf16, #tpu.memory_space<vmem>>, vector<128x128xbf16>
    %cst_15 = arith.constant dense<0.000000e+00> : vector<8x128xf32>
    %24 = tpu.matmul %14, %23, %cst_15 {dimension_numbers = #tpu.dot_dimension_numbers<[1], [0], [0], [1], [0, 0, 1, 1], [], []>} : vector<8x128xbf16>, vector<128x128xbf16>, vector<8x128xf32> -> vector<8x128xf32>
    %c0_16 = arith.constant 0 : index
    %c0_17 = arith.constant 0 : index
    %25 = vector.load %arg7[%c0_16, %c0_17] : memref<1x128xf32, #tpu.memory_space<vmem>>, vector<1x128xf32>
    %26 = vector.broadcast %25 : vector<1x128xf32> to vector<8x128xf32>
    %27 = arith.addf %24, %26 : vector<8x128xf32>
    %cst_18 = arith.constant 0.000000e+00 : f32
    %28 = vector.broadcast %cst_18 : f32 to vector<8x128xf32>
    %29 = arith.maximumf %27, %28 : vector<8x128xf32>
    %30 = arith.truncf %29 : vector<8x128xf32> to vector<8x128xbf16>
    %c0_19 = arith.constant 0 : index
    %c0_20 = arith.constant 0 : index
    %31 = vector.load %arg8[%c0_19, %c0_20] : memref<128x5xbf16, #tpu.memory_space<vmem>>, vector<128x5xbf16>
    %cst_21 = arith.constant dense<0.000000e+00> : vector<8x5xf32>
    %32 = tpu.matmul %22, %31, %cst_21 {dimension_numbers = #tpu.dot_dimension_numbers<[1], [0], [0], [1], [0, 0, 1, 1], [], []>} : vector<8x128xbf16>, vector<128x5xbf16>, vector<8x5xf32> -> vector<8x5xf32>
    %c0_22 = arith.constant 0 : index
    %c0_23 = arith.constant 0 : index
    %33 = vector.load %arg9[%c0_22, %c0_23] : memref<128x5xbf16, #tpu.memory_space<vmem>>, vector<128x5xbf16>
    %cst_24 = arith.constant dense<0.000000e+00> : vector<8x5xf32>
    %34 = tpu.matmul %30, %33, %cst_24 {dimension_numbers = #tpu.dot_dimension_numbers<[1], [0], [0], [1], [0, 0, 1, 1], [], []>} : vector<8x128xbf16>, vector<128x5xbf16>, vector<8x5xf32> -> vector<8x5xf32>
    %35 = arith.addf %32, %34 : vector<8x5xf32>
    %c0_25 = arith.constant 0 : index
    %c0_26 = arith.constant 0 : index
    %36 = vector.load %arg10[%c0_25, %c0_26] : memref<1x5xf32, #tpu.memory_space<vmem>>, vector<1x5xf32>
    %37 = vector.broadcast %36 : vector<1x5xf32> to vector<8x5xf32>
    %38 = arith.addf %35, %37 : vector<8x5xf32>
    %c0_27 = arith.constant 0 : index
    %c0_28 = arith.constant 0 : index
    %39 = vector.load %arg11[%c0_27, %c0_28] : memref<8x5xf32, #tpu.memory_space<vmem>>, vector<8x5xf32>
    tpu.vector_store %arg11[%c0_27, %c0_28], %38 {strides = array<i32>} : memref<8x5xf32, #tpu.memory_space<vmem>>, vector<8x5xf32>,
    return
  }
  func.func @transform_0(%arg0: i32) -> (i32, i32) {
    %c0_i32 = arith.constant 0 : i32
    %c0_i32_0 = arith.constant 0 : i32
    return %arg0, %c0_i32 : i32, i32
  }
  func.func @transform_1(%arg0: i32) -> (i32, i32) {
    %c0_i32 = arith.constant 0 : i32
    %c0_i32_0 = arith.constant 0 : i32
    %c0_i32_1 = arith.constant 0 : i32
    return %c0_i32, %c0_i32_0 : i32, i32
  }
  func.func @transform_2(%arg0: i32) -> (i32, i32) {
    %c0_i32 = arith.constant 0 : i32
    %c0_i32_0 = arith.constant 0 : i32
    %c0_i32_1 = arith.constant 0 : i32
    return %c0_i32, %c0_i32_0 : i32, i32
  }
  func.func @transform_3(%arg0: i32) -> (i32, i32) {
    %c0_i32 = arith.constant 0 : i32
    %c0_i32_0 = arith.constant 0 : i32
    %c0_i32_1 = arith.constant 0 : i32
    return %c0_i32, %c0_i32_0 : i32, i32
  }
  func.func @transform_4(%arg0: i32) -> (i32, i32) {
    %c0_i32 = arith.constant 0 : i32
    %c0_i32_0 = arith.constant 0 : i32
    %c0_i32_1 = arith.constant 0 : i32
    return %c0_i32, %c0_i32_0 : i32, i32
  }
  func.func @transform_5(%arg0: i32) -> (i32, i32) {
    %c0_i32 = arith.constant 0 : i32
    %c0_i32_0 = arith.constant 0 : i32
    %c0_i32_1 = arith.constant 0 : i32
    return %c0_i32, %c0_i32_0 : i32, i32
  }
  func.func @transform_6(%arg0: i32) -> (i32, i32) {
    %c0_i32 = arith.constant 0 : i32
    %c0_i32_0 = arith.constant 0 : i32
    %c0_i32_1 = arith.constant 0 : i32
    return %c0_i32, %c0_i32_0 : i32, i32
  }
  func.func @transform_7(%arg0: i32) -> (i32, i32) {
    %c0_i32 = arith.constant 0 : i32
    %c0_i32_0 = arith.constant 0 : i32
    %c0_i32_1 = arith.constant 0 : i32
    return %c0_i32, %c0_i32_0 : i32, i32
  }
  func.func @transform_8(%arg0: i32) -> (i32, i32) {
    %c0_i32 = arith.constant 0 : i32
    %c0_i32_0 = arith.constant 0 : i32
    %c0_i32_1 = arith.constant 0 : i32
    return %c0_i32, %c0_i32_0 : i32, i32
  }
  func.func @transform_9(%arg0: i32) -> (i32, i32) {
    %c0_i32 = arith.constant 0 : i32
    %c0_i32_0 = arith.constant 0 : i32
    %c0_i32_1 = arith.constant 0 : i32
    return %c0_i32, %c0_i32_0 : i32, i32
  }
  func.func @transform_10(%arg0: i32) -> (i32, i32) {
    %c0_i32 = arith.constant 0 : i32
    %c0_i32_0 = arith.constant 0 : i32
    return %arg0, %c0_i32 : i32, i32
  }
}

</mosaic_0001>

<llo_original>
// kernel: mlp_actor_critic_forward.1
$region0: #{mlp_actor_critic_forward.1}
  #allocation0 [shape = 'u32[]', space=smem, size = 0x4, offset = 0x4, fixed_abs, tag = 'smem constant byte address 0x4 - core index']
  #allocation1 [shape = 'u32[72,128]{1,0:T(1,128)}', space=vmem, size = 0x9000, scoped, tag = 'internal scratch']
  %s0 = inlined_call_operand.vmem [shape: f32[8,16], index: 0, kind: input, shape index: {}]
  %s1 = inlined_call_operand.vmem [shape: bf16[16,256], index: 1, kind: input, shape index: {}]
  %s2 = inlined_call_operand.hbm [shape: f32[1,256], index: 2, kind: input, shape index: {}]
  %s3 = inlined_call_operand.vmem [shape: bf16[128,128], index: 3, kind: input, shape index: {}]
  %s4 = inlined_call_operand.hbm [shape: f32[1,128], index: 4, kind: input, shape index: {}]
  %s5 = inlined_call_operand.vmem [shape: bf16[128,128], index: 5, kind: input, shape index: {}]
  %s6 = inlined_call_operand.hbm [shape: f32[1,128], index: 6, kind: input, shape index: {}]
  %s7 = inlined_call_operand.vmem [shape: bf16[128,5], index: 7, kind: input, shape index: {}]
  %s8 = inlined_call_operand.vmem [shape: bf16[128,5], index: 8, kind: input, shape index: {}]
  %s9 = inlined_call_operand.hbm [shape: f32[1,5], index: 9, kind: input, shape index: {}]
  %s10 = inlined_call_operand.vmem [shape: f32[8,5], index: 10, kind: output, shape index: {}]
  %s11 = sld [smem:[#allocation0]]
  $region66: #{mlp_actor_critic_forward.1} parent=0
    _
  %s13 = ssub.s32 1, %s11
  %s14 = scalar_select 0, %s13, %s11
  $region1: #{mlp_actor_critic_forward.1} parent=0
    #allocation2 [shape = 'u8[1024]{0}', space=vmem, size = 0x400, scoped, tag = 'input window, operand 2, single buffered']
    #allocation3 [shape = 's32[1]{0}', space=sflag, size = 0x4, scoped, tag = 'scoped memory for mlp_actor_critic_forward.1']
    #allocation4 [shape = 'u8[512]{0}', space=vmem, size = 0x400, scoped, tag = 'input window, operand 4, single buffered']
    #allocation5 [shape = 's32[1]{0}', space=sflag, size = 0x4, scoped, tag = 'scoped memory for mlp_actor_critic_forward.1']
    #allocation6 [shape = 'u8[512]{0}', space=vmem, size = 0x400, scoped, tag = 'input window, operand 6, single buffered']
    #allocation7 [shape = 'u8[512]{0}', space=vmem, size = 0x400, scoped, tag = 'input window, operand 9, single buffered']
    #allocation8 [shape = 's32[1]{0}', space=sflag, size = 0x4, scoped, tag = 'scoped memory for mlp_actor_critic_forward.1']
    %15 = vsyncpa [#allocation3], 0
    %16 = vsyncpa [#allocation5], 0
    %17 = vsyncpa [#allocation8], 0
    // Predicated region
    $region2: #{mlp_actor_critic_forward.1} parent=1 // pred_check
      _
    $region3: #{mlp_actor_critic_forward.1} parent=1 // pred_check_branch
      %19 = sbr.rel (0) target = $region5
    $region4: #{mlp_actor_critic_forward.1} parent=1 // pred_region
      _
    $region5: #{mlp_actor_critic_forward.1} parent=1 // pred_fallthru
      _
    // Predicated region
    $region6: #{mlp_actor_critic_forward.1} parent=1 // pred_check
      _
    $region7: #{mlp_actor_critic_forward.1} parent=1 // pred_check_branch
      %21 = sbr.rel (0) target = $region9
    $region8: #{mlp_actor_critic_forward.1} parent=1 // pred_region
      _
    $region9: #{mlp_actor_critic_forward.1} parent=1 // pred_fallthru
      _
    // Predicated region
    $region10: #{mlp_actor_critic_forward.1} parent=1 // pred_check
      _
    $region11: #{mlp_actor_critic_forward.1} parent=1 // pred_check_branch
      %23 = sbr.rel (0) target = $region13
    $region12: #{mlp_actor_critic_forward.1} parent=1 // pred_region
      %25 = vsyncadd [#allocation3], 0
      %s27 = sshll.u32 %s2, 4
      %s28 = int_to_ptr.hbm [resolvable:$true] %s27
      %s29 = sshll.u32 [#allocation2], 4
      %s30 = int_to_ptr.vmem [resolvable:$true] %s29
      %32 = dma.hbm_to_vmem [thread:$0]  %s28, 32, %s30, [#allocation3]
    $region13: #{mlp_actor_critic_forward.1} parent=1 // pred_fallthru
      _
    // Predicated region
    $region14: #{mlp_actor_critic_forward.1} parent=1 // pred_check
      _
    $region15: #{mlp_actor_critic_forward.1} parent=1 // pred_check_branch
      %34 = sbr.rel (0) target = $region17
    $region16: #{mlp_actor_critic_forward.1} parent=1 // pred_region
      _
    $region17: #{mlp_actor_critic_forward.1} parent=1 // pred_fallthru
      _
    // Predicated region
    $region18: #{mlp_actor_critic_forward.1} parent=1 // pred_check
      _
    $region19: #{mlp_actor_critic_forward.1} parent=1 // pred_check_branch
      %36 = sbr.rel (0) target = $region21
    $region20: #{mlp_actor_critic_forward.1} parent=1 // pred_region
      %38 = vsyncadd [#allocation5], 0
      %s40 = sshll.u32 %s4, 4
      %s41 = int_to_ptr.hbm [resolvable:$true] %s40
      %s42 = sshll.u32 [#allocation4], 4
      %s43 = int_to_ptr.vmem [resolvable:$true] %s42
      %45 = dma.hbm_to_vmem [thread:$0]  %s41, 16, %s43, [#allocation5]
    $region21: #{mlp_actor_critic_forward.1} parent=1 // pred_fallthru
      _
    // Predicated region
    $region22: #{mlp_actor_critic_forward.1} parent=1 // pred_check
      _
    $region23: #{mlp_actor_critic_forward.1} parent=1 // pred_check_branch
      %47 = sbr.rel (0) target = $region25
    $region24: #{mlp_actor_critic_forward.1} parent=1 // pred_region
      _
    $region25: #{mlp_actor_critic_forward.1} parent=1 // pred_fallthru
      _
    // Predicated region
    $region26: #{mlp_actor_critic_forward.1} parent=1 // pred_check
      _
    $region27: #{mlp_actor_critic_forward.1} parent=1 // pred_check_branch
      %49 = sbr.rel (0) target = $region29
    $region28: #{mlp_actor_critic_forward.1} parent=1 // pred_region
      %51 = vsyncadd [#allocation5], 0
      %s53 = sshll.u32 %s6, 4
      %s54 = int_to_ptr.hbm [resolvable:$true] %s53
      %s55 = sshll.u32 [#allocation6], 4
      %s56 = int_to_ptr.vmem [resolvable:$true] %s55
      %58 = dma.hbm_to_vmem [thread:$0]  %s54, 16, %s56, [#allocation5]
    $region29: #{mlp_actor_critic_forward.1} parent=1 // pred_fallthru
      _
    // Predicated region
    $region30: #{mlp_actor_critic_forward.1} parent=1 // pred_check
      _
    $region31: #{mlp_actor_critic_forward.1} parent=1 // pred_check_branch
      %60 = sbr.rel (0) target = $region33
    $region32: #{mlp_actor_critic_forward.1} parent=1 // pred_region
      _
    $region33: #{mlp_actor_critic_forward.1} parent=1 // pred_fallthru
      _
    // Predicated region
    $region34: #{mlp_actor_critic_forward.1} parent=1 // pred_check
      _
    $region35: #{mlp_actor_critic_forward.1} parent=1 // pred_check_branch
      %62 = sbr.rel (0) target = $region37
    $region36: #{mlp_actor_critic_forward.1} parent=1 // pred_region
      _
    $region37: #{mlp_actor_critic_forward.1} parent=1 // pred_fallthru
      _
    // Predicated region
    $region38: #{mlp_actor_critic_forward.1} parent=1 // pred_check
      _
    $region39: #{mlp_actor_critic_forward.1} parent=1 // pred_check_branch
      %64 = sbr.rel (0) target = $region41
    $region40: #{mlp_actor_critic_forward.1} parent=1 // pred_region
      %66 = vsyncadd [#allocation8], 0
      %s68 = sshll.u32 %s9, 4
      %s69 = int_to_ptr.hbm [resolvable:$true] %s68
      %s70 = sshll.u32 [#allocation7], 4
      %s71 = int_to_ptr.vmem [resolvable:$true] %s70
      %73 = dma.hbm_to_vmem [thread:$0]  %s69, 16, %s71, [#allocation8]
    $region41: #{mlp_actor_critic_forward.1} parent=1 // pred_fallthru
      _
    // Predicated region
    $region42: #{mlp_actor_critic_forward.1} parent=1 // pred_check
      _
    $region43: #{mlp_actor_critic_forward.1} parent=1 // pred_check_branch
      %75 = sbr.rel (0) target = $region45
    $region44: #{mlp_actor_critic_forward.1} parent=1 // pred_region
      %77 = dma.done [#allocation3], 32
    $region45: #{mlp_actor_critic_forward.1} parent=1 // pred_fallthru
      _
    // Predicated region
    $region46: #{mlp_actor_critic_forward.1} parent=1 // pred_check
      _
    $region47: #{mlp_actor_critic_forward.1} parent=1 // pred_check_branch
      %79 = sbr.rel (0) target = $region49
    $region48: #{mlp_actor_critic_forward.1} parent=1 // pred_region
      %81 = dma.done [#allocation5], 16
    $region49: #{mlp_actor_critic_forward.1} parent=1 // pred_fallthru
      _
    // Predicated region
    $region50: #{mlp_actor_critic_forward.1} parent=1 // pred_check
      _
    $region51: #{mlp_actor_critic_forward.1} parent=1 // pred_check_branch
      %83 = sbr.rel (0) target = $region53
    $region52: #{mlp_actor_critic_forward.1} parent=1 // pred_region
      %85 = dma.done [#allocation5], 16
    $region53: #{mlp_actor_critic_forward.1} parent=1 // pred_fallthru
      _
    // Predicated region
    $region54: #{mlp_actor_critic_forward.1} parent=1 // pred_check
      _
    $region55: #{mlp_actor_critic_forward.1} parent=1 // pred_check_branch
      %87 = sbr.rel (0) target = $region57
    $region56: #{mlp_actor_critic_forward.1} parent=1 // pred_region
      %89 = dma.done [#allocation8], 16
    $region57: #{mlp_actor_critic_forward.1} parent=1 // pred_fallthru
      _
    %v91 = vld [vmem:[%s0] sm:$0xff]
    %v92 = vpack.c.bf16 %v91, %v91
    %v93 = vld [vmem:[%s1] sm:$0xff]
    %v94 = vld [vmem:[%s1 + $0x8] sm:$0xff]
    %v95 = vld [vmem:[#allocation2] sm:$0x3]
    %v97 = vperm.slane %v95, 0
    %v98 = vperm.slane %v95, 1
    %v103 = vunpack.c.l.b16 %v93
    %v104 = vunpack.c.h.b16 %v93
    %v105 = vunpack.c.l.b16 %v94
    %v106 = vunpack.c.h.b16 %v94
    %v107 = vpack.c.b16 %v105, %v103
    %v108 = vpack.c.b16 %v106, %v104
    %vm111 = vcmask 130048
    %v113 = vsel %vm111, %v92, 0
    %115 = vmatpush.bf16.msra.mxu0 0
    %116 = vmatpush.bf16.msra.mxu0 0
    %117 = vmatpush.bf16.msra.mxu0 0
    %118 = vmatpush.bf16.msra.mxu0 0
    %119 = vmatpush.bf16.msra.mxu0 0
    %120 = vmatpush.bf16.msra.mxu0 0
    %121 = vmatpush.bf16.msra.mxu0 0
    %122 = vmatpush.bf16.msra.mxu0 %v107
    %123 = vmatmul.bf16.gmra.mxu0 %v113
    %v124 = vpop.f32.mrf.mxu0
    %v125 = vadd.f32 %v97, %v124
    %v126 = vpop.f32.mrf.mxu0
    %127 = vdwg.mxu0
    %128 = vmatpush.bf16.msra.mxu0 0
    %129 = vmatpush.bf16.msra.mxu0 0
    %130 = vmatpush.bf16.msra.mxu0 0
    %131 = vmatpush.bf16.msra.mxu0 0
    %132 = vmatpush.bf16.msra.mxu0 0
    %133 = vmatpush.bf16.msra.mxu0 0
    %134 = vmatpush.bf16.msra.mxu0 0
    %135 = vmatpush.bf16.msra.mxu0 %v108
    %136 = vmatmul.bf16.gmra.mxu0 %v113
    %v137 = vpop.f32.mrf.mxu0
    %v138 = vadd.f32 %v98, %v137
    %v139 = vpop.f32.mrf.mxu0
    %140 = vdwg.mxu0
    %v141 = vmax.f32 %v125, 0.0
    %v142 = vpack.c.bf16 %v141, %v141
    %v143 = vmax.f32 %v138, 0.0
    %v144 = vpack.c.bf16 %v143, %v143
    %v145 = vld [vmem:[%s3] sm:$0xf]
    %v146 = vld [vmem:[%s3 + $0x4] sm:$0xf]
    %v147 = vld [vmem:[%s3 + $0x8] sm:$0xf]
    %v148 = vld [vmem:[%s3 + $0xc] sm:$0xf]
    %v149 = vld [vmem:[%s3 + $0x10] sm:$0xf]
    %v150 = vld [vmem:[%s3 + $0x14] sm:$0xf]
    %v151 = vld [vmem:[%s3 + $0x18] sm:$0xf]
    %v152 = vld [vmem:[%s3 + $0x1c] sm:$0xf]
    %v153 = vld [vmem:[%s3 + $0x20] sm:$0xf]
    %v154 = vld [vmem:[%s3 + $0x24] sm:$0xf]
    %v155 = vld [vmem:[%s3 + $0x28] sm:$0xf]
    %v156 = vld [vmem:[%s3 + $0x2c] sm:$0xf]
    %v157 = vld [vmem:[%s3 + $0x30] sm:$0xf]
    %v158 = vld [vmem:[%s3 + $0x34] sm:$0xf]
    %v159 = vld [vmem:[%s3 + $0x38] sm:$0xf]
    %v160 = vld [vmem:[%s3 + $0x3c] sm:$0xf]
    %v161 = vld [vmem:[#allocation4] sm:$0x1]
    %v163 = vperm.slane %v161, 0
    %v181 = vunpack.c.l.b16 %v145
    %v182 = vunpack.c.l.b16 %v146
    %v183 = vunpack.c.l.b16 %v147
    %v184 = vunpack.c.l.b16 %v148
    %v185 = vunpack.c.l.b16 %v149
    %v186 = vunpack.c.l.b16 %v150
    %v187 = vunpack.c.l.b16 %v151
    %v188 = vunpack.c.l.b16 %v152
    %v189 = vunpack.c.l.b16 %v153
    %v190 = vunpack.c.l.b16 %v154
    %v191 = vunpack.c.l.b16 %v155
    %v192 = vunpack.c.l.b16 %v156
    %v193 = vunpack.c.l.b16 %v157
    %v194 = vunpack.c.l.b16 %v158
    %v195 = vunpack.c.l.b16 %v159
    %v196 = vunpack.c.l.b16 %v160
    %v197 = vpack.c.b16 %v182, %v181
    %v198 = vpack.c.b16 %v184, %v183
    %v199 = vpack.c.b16 %v186, %v185
    %v200 = vpack.c.b16 %v188, %v187
    %v201 = vpack.c.b16 %v190, %v189
    %v202 = vpack.c.b16 %v192, %v191
    %v203 = vpack.c.b16 %v194, %v193
    %v204 = vpack.c.b16 %v196, %v195
    %213 = vmatpush.bf16.msra.mxu0 %v204
    %214 = vmatpush.bf16.msra.mxu0 %v203
    %215 = vmatpush.bf16.msra.mxu0 %v202
    %216 = vmatpush.bf16.msra.mxu0 %v201
    %217 = vmatpush.bf16.msra.mxu0 %v200
    %218 = vmatpush.bf16.msra.mxu0 %v199
    %219 = vmatpush.bf16.msra.mxu0 %v198
    %220 = vmatpush.bf16.msra.mxu0 %v197
    %221 = vmatmul.bf16.gmra.mxu0 %v142
    %v222 = vpop.f32.mrf.mxu0
    %v223 = vadd.f32 %v163, %v222
    %v224 = vpop.f32.mrf.mxu0
    %225 = vdwg.mxu0
    %v226 = vmax.f32 %v223, 0.0
    %v227 = vpack.c.bf16 %v226, %v226
    %v228 = vld [vmem:[%s5] sm:$0xf]
    %v229 = vld [vmem:[%s5 + $0x4] sm:$0xf]
    %v230 = vld [vmem:[%s5 + $0x8] sm:$0xf]
    %v231 = vld [vmem:[%s5 + $0xc] sm:$0xf]
    %v232 = vld [vmem:[%s5 + $0x10] sm:$0xf]
    %v233 = vld [vmem:[%s5 + $0x14] sm:$0xf]
    %v234 = vld [vmem:[%s5 + $0x18] sm:$0xf]
    %v235 = vld [vmem:[%s5 + $0x1c] sm:$0xf]
    %v236 = vld [vmem:[%s5 + $0x20] sm:$0xf]
    %v237 = vld [vmem:[%s5 + $0x24] sm:$0xf]
    %v238 = vld [vmem:[%s5 + $0x28] sm:$0xf]
    %v239 = vld [vmem:[%s5 + $0x2c] sm:$0xf]
    %v240 = vld [vmem:[%s5 + $0x30] sm:$0xf]
    %v241 = vld [vmem:[%s5 + $0x34] sm:$0xf]
    %v242 = vld [vmem:[%s5 + $0x38] sm:$0xf]
    %v243 = vld [vmem:[%s5 + $0x3c] sm:$0xf]
    %v244 = vld [vmem:[#allocation6] sm:$0x1]
    %v246 = vperm.slane %v244, 0
    %v264 = vunpack.c.l.b16 %v228
    %v265 = vunpack.c.l.b16 %v229
    %v266 = vunpack.c.l.b16 %v230
    %v267 = vunpack.c.l.b16 %v231
    %v268 = vunpack.c.l.b16 %v232
    %v269 = vunpack.c.l.b16 %v233
    %v270 = vunpack.c.l.b16 %v234
    %v271 = vunpack.c.l.b16 %v235
    %v272 = vunpack.c.l.b16 %v236
    %v273 = vunpack.c.l.b16 %v237
    %v274 = vunpack.c.l.b16 %v238
    %v275 = vunpack.c.l.b16 %v239
    %v276 = vunpack.c.l.b16 %v240
    %v277 = vunpack.c.l.b16 %v241
    %v278 = vunpack.c.l.b16 %v242
    %v279 = vunpack.c.l.b16 %v243
    %v280 = vpack.c.b16 %v265, %v264
    %v281 = vpack.c.b16 %v267, %v266
    %v282 = vpack.c.b16 %v269, %v268
    %v283 = vpack.c.b16 %v271, %v270
    %v284 = vpack.c.b16 %v273, %v272
    %v285 = vpack.c.b16 %v275, %v274
    %v286 = vpack.c.b16 %v277, %v276
    %v287 = vpack.c.b16 %v279, %v278
    %296 = vmatpush.bf16.msra.mxu0 %v287
    %297 = vmatpush.bf16.msra.mxu0 %v286
    %298 = vmatpush.bf16.msra.mxu0 %v285
    %299 = vmatpush.bf16.msra.mxu0 %v284
    %300 = vmatpush.bf16.msra.mxu0 %v283
    %301 = vmatpush.bf16.msra.mxu0 %v282
    %302 = vmatpush.bf16.msra.mxu0 %v281
    %303 = vmatpush.bf16.msra.mxu0 %v280
    %304 = vmatmul.bf16.gmra.mxu0 %v144
    %v305 = vpop.f32.mrf.mxu0
    %v306 = vadd.f32 %v246, %v305
    %v307 = vpop.f32.mrf.mxu0
    %308 = vdwg.mxu0
    %v309 = vmax.f32 %v306, 0.0
    %v310 = vpack.c.bf16 %v309, %v309
    %v311 = vld [vmem:[%s7] sm:$0xf]
    %v312 = vld [vmem:[%s7 + $0x4] sm:$0xf]
    %v313 = vld [vmem:[%s7 + $0x8] sm:$0xf]
    %v314 = vld [vmem:[%s7 + $0xc] sm:$0xf]
    %v315 = vld [vmem:[%s7 + $0x10] sm:$0xf]
    %v316 = vld [vmem:[%s7 + $0x14] sm:$0xf]
    %v317 = vld [vmem:[%s7 + $0x18] sm:$0xf]
    %v318 = vld [vmem:[%s7 + $0x1c] sm:$0xf]
    %v319 = vld [vmem:[%s7 + $0x20] sm:$0xf]
    %v320 = vld [vmem:[%s7 + $0x24] sm:$0xf]
    %v321 = vld [vmem:[%s7 + $0x28] sm:$0xf]
    %v322 = vld [vmem:[%s7 + $0x2c] sm:$0xf]
    %v323 = vld [vmem:[%s7 + $0x30] sm:$0xf]
    %v324 = vld [vmem:[%s7 + $0x34] sm:$0xf]
    %v325 = vld [vmem:[%s7 + $0x38] sm:$0xf]
    %v326 = vld [vmem:[%s7 + $0x3c] sm:$0xf]
    %v327 = vld [vmem:[%s8] sm:$0xf]
    %v328 = vld [vmem:[%s8 + $0x4] sm:$0xf]
    %v329 = vld [vmem:[%s8 + $0x8] sm:$0xf]
    %v330 = vld [vmem:[%s8 + $0xc] sm:$0xf]
    %v331 = vld [vmem:[%s8 + $0x10] sm:$0xf]
    %v332 = vld [vmem:[%s8 + $0x14] sm:$0xf]
    %v333 = vld [vmem:[%s8 + $0x18] sm:$0xf]
    %v334 = vld [vmem:[%s8 + $0x1c] sm:$0xf]
    %v335 = vld [vmem:[%s8 + $0x20] sm:$0xf]
    %v336 = vld [vmem:[%s8 + $0x24] sm:$0xf]
    %v337 = vld [vmem:[%s8 + $0x28] sm:$0xf]
    %v338 = vld [vmem:[%s8 + $0x2c] sm:$0xf]
    %v339 = vld [vmem:[%s8 + $0x30] sm:$0xf]
    %v340 = vld [vmem:[%s8 + $0x34] sm:$0xf]
    %v341 = vld [vmem:[%s8 + $0x38] sm:$0xf]
    %v342 = vld [vmem:[%s8 + $0x3c] sm:$0xf]
    %v359 = vunpack.c.l.b16 %v327
    %v360 = vunpack.c.l.b16 %v328
    %v361 = vunpack.c.l.b16 %v329
    %v362 = vunpack.c.l.b16 %v330
    %v363 = vunpack.c.l.b16 %v331
    %v364 = vunpack.c.l.b16 %v332
    %v365 = vunpack.c.l.b16 %v333
    %v366 = vunpack.c.l.b16 %v334
    %v367 = vunpack.c.l.b16 %v335
    %v368 = vunpack.c.l.b16 %v336
    %v369 = vunpack.c.l.b16 %v337
    %v370 = vunpack.c.l.b16 %v338
    %v371 = vunpack.c.l.b16 %v339
    %v372 = vunpack.c.l.b16 %v340
    %v373 = vunpack.c.l.b16 %v341
    %v374 = vunpack.c.l.b16 %v342
    %v375 = vpack.c.b16 %v360, %v359
    %v376 = vpack.c.b16 %v362, %v361
    %v377 = vpack.c.b16 %v364, %v363
    %v378 = vpack.c.b16 %v366, %v365
    %v379 = vpack.c.b16 %v368, %v367
    %v380 = vpack.c.b16 %v370, %v369
    %v381 = vpack.c.b16 %v372, %v371
    %v382 = vpack.c.b16 %v374, %v373
    %391 = vmatpush.bf16.msra.mxu0 %v382
    %392 = vmatpush.bf16.msra.mxu0 %v381
    %393 = vmatpush.bf16.msra.mxu0 %v380
    %394 = vmatpush.bf16.msra.mxu0 %v379
    %395 = vmatpush.bf16.msra.mxu0 %v378
    %396 = vmatpush.bf16.msra.mxu0 %v377
    %397 = vmatpush.bf16.msra.mxu0 %v376
    %398 = vmatpush.bf16.msra.mxu0 %v375
    %399 = vmatmul.bf16.gmra.mxu0 %v310
    %v400 = vpop.f32.mrf.mxu0
    %v401 = vadd.f32 0.0, %v400
    %v402 = vpop.f32.mrf.mxu0
    %403 = vdwg.mxu0
    %v420 = vunpack.c.l.b16 %v311
    %v421 = vunpack.c.l.b16 %v312
    %v422 = vunpack.c.l.b16 %v313
    %v423 = vunpack.c.l.b16 %v314
    %v424 = vunpack.c.l.b16 %v315
    %v425 = vunpack.c.l.b16 %v316
    %v426 = vunpack.c.l.b16 %v317
    %v427 = vunpack.c.l.b16 %v318
    %v428 = vunpack.c.l.b16 %v319
    %v429 = vunpack.c.l.b16 %v320
    %v430 = vunpack.c.l.b16 %v321
    %v431 = vunpack.c.l.b16 %v322
    %v432 = vunpack.c.l.b16 %v323
    %v433 = vunpack.c.l.b16 %v324
    %v434 = vunpack.c.l.b16 %v325
    %v435 = vunpack.c.l.b16 %v326
    %v436 = vpack.c.b16 %v421, %v420
    %v437 = vpack.c.b16 %v423, %v422
    %v438 = vpack.c.b16 %v425, %v424
    %v439 = vpack.c.b16 %v427, %v426
    %v440 = vpack.c.b16 %v429, %v428
    %v441 = vpack.c.b16 %v431, %v430
    %v442 = vpack.c.b16 %v433, %v432
    %v443 = vpack.c.b16 %v435, %v434
    %452 = vmatpush.bf16.msra.mxu0 %v443
    %453 = vmatpush.bf16.msra.mxu0 %v442
    %454 = vmatpush.bf16.msra.mxu0 %v441
    %455 = vmatpush.bf16.msra.mxu0 %v440
    %456 = vmatpush.bf16.msra.mxu0 %v439
    %457 = vmatpush.bf16.msra.mxu0 %v438
    %458 = vmatpush.bf16.msra.mxu0 %v437
    %459 = vmatpush.bf16.msra.mxu0 %v436
    %460 = vmatmul.bf16.gmra.mxu0 %v227
    %v461 = vpop.f32.mrf.mxu0
    %v462 = vadd.f32 %v401, %v461
    %v463 = vpop.f32.mrf.mxu0
    %464 = vdwg.mxu0
    %v465 = vld [vmem:[#allocation7] sm:$0x1]
    %v467 = vperm.slane %v465, 0
    %v469 = vadd.f32 %v462, %v467
    %vm470 = vcmask 39936
    %471 = vst.msk [vmem:[%s10] sm:$0xff] %vm470, %v469
    // Predicated region
    $region58: #{mlp_actor_critic_forward.1} parent=1 // pred_check
      _
    $region59: #{mlp_actor_critic_forward.1} parent=1 // pred_check_branch
      %473 = sbr.rel (0) target = $region61
    $region60: #{mlp_actor_critic_forward.1} parent=1 // pred_region
      _
    $region61: #{mlp_actor_critic_forward.1} parent=1 // pred_fallthru
      _
    // Predicated region
    $region62: #{mlp_actor_critic_forward.1} parent=1 // pred_check
      _
    $region63: #{mlp_actor_critic_forward.1} parent=1 // pred_check_branch
      %475 = sbr.rel (0) target = $region65
    $region64: #{mlp_actor_critic_forward.1} parent=1 // pred_region
      _
    $region65: #{mlp_actor_critic_forward.1} parent=1 // pred_fallthru
      _
    %476 = vsyncpa [#allocation3], 1
    %477 = vsyncpa [#allocation5], 1
    %478 = vsyncpa [#allocation8], 1

</llo_original>
